<compile_context>
chip_gen: v7x
topology: tpu7x:2x2x1
jax: 0.10.0
libtpu: 0.0.40
codegen_flags: <defaults>
</compile_context>

<pallas_src>
import functools
import math

import jax
import jax.numpy as jnp
from jax import lax
from jax.experimental import pallas as pl
from jax.experimental.pallas import tpu as pltpu


_GELU_C = math.sqrt(2.0 / math.pi)
_VMEM_LIMIT = 48 * 1024 * 1024  # 48 MiB: safe on v7x (64 MiB phys), plenty on v5e/v6e


def _pick_tile(dim, candidates):
    """Largest candidate tile that evenly divides `dim`, else the full dim."""
    # TODO(synk): pad awkward (non-multiple-of-128) dims in the wrapper instead
    # of falling back to a full-dim block (harmless at the demo shapes).
    for c in candidates:
        if dim % c == 0:
            return c
    return dim


def _cparams(dims):
    return pltpu.CompilerParams(dimension_semantics=dims,
                                vmem_limit_bytes=_VMEM_LIMIT)


# ---------------------------------------------------------------------------
# LayerNorm statistics only (mean, rstd); normalization is fused downstream.
# ---------------------------------------------------------------------------

def _ln_stats_kernel(x_ref, mu_ref, rstd_ref, *, eps):
    x = x_ref[...].astype(jnp.float32)
    mu = jnp.mean(x, axis=-1, keepdims=True)
    xc = x - mu
    var = jnp.mean(xc * xc, axis=-1, keepdims=True)
    mu_ref[...] = mu
    rstd_ref[...] = jax.lax.rsqrt(var + eps)


def pallas_ln_stats(x2d, eps=1e-5):
    M, D = x2d.shape
    tm = _pick_tile(M, (512, 256, 128))
    return pl.pallas_call(
        functools.partial(_ln_stats_kernel, eps=eps),
        out_shape=(jax.ShapeDtypeStruct((M, 1), jnp.float32),
                   jax.ShapeDtypeStruct((M, 1), jnp.float32)),
        grid=(M // tm,),
        in_specs=[pl.BlockSpec((tm, D), lambda i: (i, 0))],
        out_specs=(pl.BlockSpec((tm, 1), lambda i: (i, 0)),
                   pl.BlockSpec((tm, 1), lambda i: (i, 0))),
        compiler_params=_cparams(("parallel",)),
    )(x2d)


def _apply_ln(x, mu_ref, rstd_ref, g_ref, be_ref, out_dtype):
    xf = (x.astype(jnp.float32) - mu_ref[...]) * rstd_ref[...]
    xf = xf * g_ref[...].astype(jnp.float32) + be_ref[...].astype(jnp.float32)
    return xf.astype(out_dtype)


# ---------------------------------------------------------------------------
# Tiled linear: y = (LN(x)) @ w (+ bias) (+ residual), fp32 accumulator
# ---------------------------------------------------------------------------

def _make_linear_kernel(has_ln, has_bias, has_residual):
    def kernel(*refs):
        it = iter(refs)
        x_ref = next(it)
        w_ref = next(it)
        if has_ln:
            mu_ref, rstd_ref, g_ref, be_ref = next(it), next(it), next(it), next(it)
        if has_bias:
            b_ref = next(it)
        if has_residual:
            r_ref = next(it)
        o_ref = next(it)
        acc_ref = next(it)

        @pl.when(pl.program_id(2) == 0)
        def _init():
            acc_ref[...] = jnp.zeros_like(acc_ref)

        x = x_ref[...]
        if has_ln:
            x = _apply_ln(x, mu_ref, rstd_ref, g_ref, be_ref, x_ref.dtype)
        acc_ref[...] += jnp.dot(x, w_ref[...], preferred_element_type=jnp.float32)

        @pl.when(pl.program_id(2) == pl.num_programs(2) - 1)
        def _finalize():
            r = acc_ref[...]
            if has_bias:
                r = r + b_ref[...].astype(jnp.float32)
            if has_residual:
                r = r + r_ref[...].astype(jnp.float32)
            o_ref[...] = r.astype(o_ref.dtype)

    return kernel


def pallas_linear(x2d, w, b=None, residual=None, ln=None):
    M, K = x2d.shape
    K2, N = w.shape
    assert K == K2
    tm = _pick_tile(M, (512, 256, 128))
    tn = _pick_tile(N, (256, 128))
    tk = _pick_tile(K, (512, 256, 128))

    in_specs = [
        pl.BlockSpec((tm, tk), lambda i, j, k: (i, k)),
        pl.BlockSpec((tk, tn), lambda i, j, k: (k, j)),
    ]
    args = [x2d, w]
    if ln is not None:
        mu, rstd, gamma, beta = ln
        in_specs += [
            pl.BlockSpec((tm, 1), lambda i, j, k: (i, 0)),
            pl.BlockSpec((tm, 1), lambda i, j, k: (i, 0)),
            pl.BlockSpec((1, tk), lambda i, j, k: (0, k)),
            pl.BlockSpec((1, tk), lambda i, j, k: (0, k)),
        ]
        args += [mu, rstd, gamma.reshape(1, K), beta.reshape(1, K)]
    if b is not None:
        in_specs.append(pl.BlockSpec((1, tn), lambda i, j, k: (0, j)))
        args.append(b.reshape(1, N))
    if residual is not None:
        assert residual.shape == (M, N)
        in_specs.append(pl.BlockSpec((tm, tn), lambda i, j, k: (i, j)))
        args.append(residual)

    return pl.pallas_call(
        _make_linear_kernel(ln is not None, b is not None, residual is not None),
        out_shape=jax.ShapeDtypeStruct((M, N), x2d.dtype),
        grid=(M // tm, N // tn, K // tk),
        in_specs=in_specs,
        out_specs=pl.BlockSpec((tm, tn), lambda i, j, k: (i, j)),
        scratch_shapes=[pltpu.VMEM((tm, tn), jnp.float32)],
        compiler_params=_cparams(("parallel", "parallel", "arbitrary")),
    )(*args)


# ---------------------------------------------------------------------------
# Fused QKV projection for self-attention:
#   q  = LN(x) @ w_q_scaled        (softmax scale folded into weights)
#   kv = LN(x) @ [w_k | w_v]
# Single read of the raw x tile; LN applied in-register.
# ---------------------------------------------------------------------------

def _make_qkv_kernel(has_ln):
    def kernel(*refs):
        it = iter(refs)
        x_ref = next(it)
        wq_ref = next(it)
        wkv_ref = next(it)
        if has_ln:
            mu_ref, rstd_ref, g_ref, be_ref = next(it), next(it), next(it), next(it)
        q_ref = next(it)
        kv_ref = next(it)
        accq = next(it)
        acckv = next(it)

        k = pl.program_id(1)

        @pl.when(k == 0)
        def _init():
            accq[...] = jnp.zeros_like(accq)
            acckv[...] = jnp.zeros_like(acckv)

        x = x_ref[...]
        if has_ln:
            x = _apply_ln(x, mu_ref, rstd_ref, g_ref, be_ref, x_ref.dtype)
        accq[...] += jnp.dot(x, wq_ref[...], preferred_element_type=jnp.float32)
        acckv[...] += jnp.dot(x, wkv_ref[...], preferred_element_type=jnp.float32)

        @pl.when(k == pl.num_programs(1) - 1)
        def _finalize():
            q_ref[...] = accq[...].astype(q_ref.dtype)
            kv_ref[...] = acckv[...].astype(kv_ref.dtype)

    return kernel


def pallas_qkv(x2d, w_q_scaled, w_kv, ln=None):
    M, K = x2d.shape
    _, HD = w_q_scaled.shape
    _, HD2 = w_kv.shape
    tm = _pick_tile(M, (512, 256, 128))
    tk = _pick_tile(K, (512, 256, 128))

    in_specs = [
        pl.BlockSpec((tm, tk), lambda i, k: (i, k)),
        pl.BlockSpec((tk, HD), lambda i, k: (k, 0)),
        pl.BlockSpec((tk, HD2), lambda i, k: (k, 0)),
    ]
    args = [x2d, w_q_scaled, w_kv]
    if ln is not None:
        mu, rstd, gamma, beta = ln
        in_specs += [
            pl.BlockSpec((tm, 1), lambda i, k: (i, 0)),
            pl.BlockSpec((tm, 1), lambda i, k: (i, 0)),
            pl.BlockSpec((1, tk), lambda i, k: (0, k)),
            pl.BlockSpec((1, tk), lambda i, k: (0, k)),
        ]
        args += [mu, rstd, gamma.reshape(1, K), beta.reshape(1, K)]

    return pl.pallas_call(
        _make_qkv_kernel(ln is not None),
        out_shape=(jax.ShapeDtypeStruct((M, HD), x2d.dtype),
                   jax.ShapeDtypeStruct((M, HD2), x2d.dtype)),
        grid=(M // tm, K // tk),
        in_specs=in_specs,
        out_specs=(pl.BlockSpec((tm, HD), lambda i, k: (i, 0)),
                   pl.BlockSpec((tm, HD2), lambda i, k: (i, 0))),
        scratch_shapes=[pltpu.VMEM((tm, HD), jnp.float32),
                        pltpu.VMEM((tm, HD2), jnp.float32)],
        compiler_params=_cparams(("parallel", "arbitrary")),
    )(*args)


# ---------------------------------------------------------------------------
# Fused GEGLU:  (LN(x) @ wx + bx) * gelu(LN(x) @ wg + bg)
# ---------------------------------------------------------------------------

def _make_geglu_kernel(has_ln):
    def kernel(*refs):
        it = iter(refs)
        x_ref = next(it)
        wx_ref = next(it)
        wg_ref = next(it)
        if has_ln:
            mu_ref, rstd_ref, g_ref, be_ref = next(it), next(it), next(it), next(it)
        bx_ref = next(it)
        bg_ref = next(it)
        o_ref = next(it)
        accx_ref = next(it)
        accg_ref = next(it)

        @pl.when(pl.program_id(2) == 0)
        def _init():
            accx_ref[...] = jnp.zeros_like(accx_ref)
            accg_ref[...] = jnp.zeros_like(accg_ref)

        x = x_ref[...]
        if has_ln:
            x = _apply_ln(x, mu_ref, rstd_ref, g_ref, be_ref, x_ref.dtype)
        accx_ref[...] += jnp.dot(x, wx_ref[...], preferred_element_type=jnp.float32)
        accg_ref[...] += jnp.dot(x, wg_ref[...], preferred_element_type=jnp.float32)

        @pl.when(pl.program_id(2) == pl.num_programs(2) - 1)
        def _finalize():
            a = accx_ref[...] + bx_ref[...].astype(jnp.float32)
            g = accg_ref[...] + bg_ref[...].astype(jnp.float32)
            # TODO(synk): tanh-approximate GELU (PyTorch F.gelu default is the
            # exact erf form; deviation is <~1e-3 and the reference matches).
            gg = 0.5 * g * (1.0 + jnp.tanh(_GELU_C * (g + 0.044715 * g * g * g)))
            o_ref[...] = (a * gg).astype(o_ref.dtype)

    return kernel


def pallas_geglu(x2d, wx, wg, bx, bg, ln=None):
    M, K = x2d.shape
    _, N = wx.shape
    tm = _pick_tile(M, (512, 256, 128))
    tn = _pick_tile(N, (256, 128))
    tk = _pick_tile(K, (512, 256, 128))

    in_specs = [
        pl.BlockSpec((tm, tk), lambda i, j, k: (i, k)),
        pl.BlockSpec((tk, tn), lambda i, j, k: (k, j)),
        pl.BlockSpec((tk, tn), lambda i, j, k: (k, j)),
    ]
    args = [x2d, wx, wg]
    if ln is not None:
        mu, rstd, gamma, beta = ln
        in_specs += [
            pl.BlockSpec((tm, 1), lambda i, j, k: (i, 0)),
            pl.BlockSpec((tm, 1), lambda i, j, k: (i, 0)),
            pl.BlockSpec((1, tk), lambda i, j, k: (0, k)),
            pl.BlockSpec((1, tk), lambda i, j, k: (0, k)),
        ]
        args += [mu, rstd, gamma.reshape(1, K), beta.reshape(1, K)]
    in_specs += [
        pl.BlockSpec((1, tn), lambda i, j, k: (0, j)),
        pl.BlockSpec((1, tn), lambda i, j, k: (0, j)),
    ]
    args += [bx.reshape(1, N), bg.reshape(1, N)]

    return pl.pallas_call(
        _make_geglu_kernel(ln is not None),
        out_shape=jax.ShapeDtypeStruct((M, N), x2d.dtype),
        grid=(M // tm, N // tn, K // tk),
        in_specs=in_specs,
        out_specs=pl.BlockSpec((tm, tn), lambda i, j, k: (i, j)),
        scratch_shapes=[pltpu.VMEM((tm, tn), jnp.float32),
                        pltpu.VMEM((tm, tn), jnp.float32)],
        compiler_params=_cparams(("parallel", "parallel", "arbitrary")),
    )(*args)


# ---------------------------------------------------------------------------
# Flash attention (online softmax, kv-tiled, all heads per grid step).
# Per-head Q slices hoisted into VMEM scratch at ki==0; per-head finalize
# stores (no concatenate temp).  Softmax scale is pre-folded into Q weights.
# ---------------------------------------------------------------------------

def _flash_attn_kernel(q_ref, kv_ref, o_ref, q_sc, m_sc, l_sc, acc_sc,
                       *, heads, dim_head):
    ki = pl.program_id(2)
    hd = heads * dim_head

    @pl.when(ki == 0)
    def _init():
        m_sc[...] = jnp.full_like(m_sc[...], -jnp.inf)
        l_sc[...] = jnp.zeros_like(l_sc[...])
        acc_sc[...] = jnp.zeros_like(acc_sc[...])
        q_all = q_ref[0]                                   # (tq, heads*dim_head)
        for h in range(heads):
            q_sc[h] = q_all[:, h * dim_head:(h + 1) * dim_head]

    kv_all = kv_ref[0]      # (tk, 2*heads*dim_head): [K | V]

    # TODO(synk): for heads >= 8 consider lax.fori_loop / batched dot_general to
    # bound live ranges; static unroll is fine for typical SD head counts.
    for h in range(heads):
        lo, hi = h * dim_head, (h + 1) * dim_head
        qh = q_sc[h]                                       # (tq, d), bf16
        kh = kv_all[:, lo:hi]                              # (tk, d)
        vh = kv_all[:, hd + lo:hd + hi]                    # (tk, d)
        # Contract on d of both operands (no explicit k.T).
        s = lax.dot_general(qh, kh, (((1,), (1,)), ((), ())),
                            preferred_element_type=jnp.float32)  # (tq, tk)
        m_prev = m_sc[h]
        m_new = jnp.maximum(m_prev, jnp.max(s, axis=-1, keepdims=True))
        alpha = jnp.exp(m_prev - m_new)
        p = jnp.exp(s - m_new)
        l_sc[h] = alpha * l_sc[h] + jnp.sum(p, axis=-1, keepdims=True)
        acc_sc[h] = alpha * acc_sc[h] + jnp.dot(
            p.astype(vh.dtype), vh, preferred_element_type=jnp.float32)
        m_sc[h] = m_new

    @pl.when(ki == pl.num_programs(2) - 1)
    def _finalize():
        for h in range(heads):
            lo, hi = h * dim_head, (h + 1) * dim_head
            l = l_sc[h]
            r = pl.reciprocal(l, approx=True)
            r = r * (2.0 - l * r)                          # one Newton step -> fp32 acc
            o_ref[0, :, lo:hi] = (acc_sc[h] * r).astype(o_ref.dtype)


def pallas_flash_attention(q, kv, *, heads, dim_head):
    """q: (B, Nq, heads*dim_head) pre-scaled; kv: (B, Nk, 2*heads*dim_head)."""
    B, Nq, HD = q.shape
    _, Nk, HD2 = kv.shape
    assert HD == heads * dim_head and HD2 == 2 * HD
    tq = _pick_tile(Nq, (512, 256, 128))
    tk = _pick_tile(Nk, (1024, 512, 256, 128))
    kern = functools.partial(_flash_attn_kernel, heads=heads, dim_head=dim_head)
    return pl.pallas_call(
        kern,
        out_shape=jax.ShapeDtypeStruct((B, Nq, HD), q.dtype),
        grid=(B, Nq // tq, Nk // tk),
        in_specs=[
            pl.BlockSpec((1, tq, HD), lambda b, qi, ki: (b, qi, 0)),
            pl.BlockSpec((1, tk, HD2), lambda b, qi, ki: (b, ki, 0)),
        ],
        out_specs=pl.BlockSpec((1, tq, HD), lambda b, qi, ki: (b, qi, 0)),
        scratch_shapes=[
            pltpu.VMEM((heads, tq, dim_head), q.dtype),      # hoisted per-head Q
            pltpu.VMEM((heads, tq, 1), jnp.float32),         # running max
            pltpu.VMEM((heads, tq, 1), jnp.float32),         # running denom
            pltpu.VMEM((heads, tq, dim_head), jnp.float32),  # fp32 output acc
        ],
        compiler_params=_cparams(("parallel", "parallel", "arbitrary")),
    )(q, kv)


# ---------------------------------------------------------------------------
# Module wrapper
# ---------------------------------------------------------------------------

class BasicTransformerBlockPallas:
    def __init__(self, dim, n_heads, d_head, dropout=0.0, context_dim=None,
                 gated_ff=True, checkpoint=True, disable_self_attn=False, *,
                 key, compute_dtype=jnp.bfloat16):
        assert gated_ff, "only the gated (GEGLU) feed-forward path is implemented"
        self.dim = dim
        self.n_heads = n_heads
        self.d_head = d_head
        self.scale = d_head ** (-0.5)
        self.disable_self_attn = disable_self_attn
        self.compute_dtype = compute_dtype
        inner = n_heads * d_head
        ff_inner = 4 * dim
        ctx_dim = dim if context_dim is None else context_dim
        attn1_ctx = ctx_dim if disable_self_attn else dim
        cd = compute_dtype

        keys = iter(jax.random.split(key, 16))

        # PyTorch nn.Linear init: U(-1/sqrt(fan_in), 1/sqrt(fan_in)); weights
        # stored pre-transposed as (in, out), then cast to the compute dtype.
        def lin_w(k, fan_in, fan_out):
            bound = 1.0 / math.sqrt(fan_in)
            return jax.random.uniform(k, (fan_in, fan_out), jnp.float32,
                                      -bound, bound)

        def lin_b(k, fan_in, fan_out):
            bound = 1.0 / math.sqrt(fan_in)
            return jax.random.uniform(k, (fan_out,), jnp.float32, -bound, bound)

        def make_attn(q_in, ctx_in):
            w_q = lin_w(next(keys), q_in, inner)
            w_k = lin_w(next(keys), ctx_in, inner)
            w_v = lin_w(next(keys), ctx_in, inner)
            w_o = lin_w(next(keys), inner, q_in)
            b_o = lin_b(next(keys), inner, q_in)
            return {
                "w_q_scaled": (w_q * self.scale).astype(cd),       # scale folded
                "w_kv": jnp.concatenate([w_k, w_v], axis=1).astype(cd),  # fused K|V
                "w_o": w_o.astype(cd),
                "b_o": b_o,                                        # f32 (finalize add)
            }

        self.attn1 = make_attn(dim, attn1_ctx)
        self.attn2 = make_attn(dim, ctx_dim)

        # FeedForward: GEGLU(dim -> ff_inner) then Linear(ff_inner -> dim).
        w_ff1 = lin_w(next(keys), dim, 2 * ff_inner)
        b_ff1 = lin_b(next(keys), dim, 2 * ff_inner)
        self.ff_wx = w_ff1[:, :ff_inner].astype(cd)
        self.ff_wg = w_ff1[:, ff_inner:].astype(cd)
        self.ff_bx, self.ff_bg = b_ff1[:ff_inner], b_ff1[ff_inner:]
        self.ff_w2 = lin_w(next(keys), ff_inner, dim).astype(cd)
        self.ff_b2 = lin_b(next(keys), ff_inner, dim)

        # LayerNorms (PyTorch defaults: weight=1, bias=0, eps=1e-5), kept f32.
        self.norm1_g = jnp.ones((dim,), jnp.float32)
        self.norm1_b = jnp.zeros((dim,), jnp.float32)
        self.norm2_g = jnp.ones((dim,), jnp.float32)
        self.norm2_b = jnp.zeros((dim,), jnp.float32)
        self.norm3_g = jnp.ones((dim,), jnp.float32)
        self.norm3_b = jnp.zeros((dim,), jnp.float32)

        # TODO(synk): torch.utils.checkpoint only affects backward-pass memory;
        # forward semantics are identical, so it is a no-op here.
        self.checkpoint = checkpoint
        self.dropout = dropout  # p=0.0 / eval mode -> identity

    def _attention(self, x2d, ln, B, N, ctx3d, params):
        """x2d: (B*N, dim) raw residual stream; ln: fused LayerNorm params."""
        HD = self.n_heads * self.d_head
        if ctx3d is None:
            # self-attention: fused Q|K|V projection, LN applied in-kernel.
            q, kv = pallas_qkv(x2d, params["w_q_scaled"], params["w_kv"], ln=ln)
            Nk = N
        else:
            # cross-attention: Q from LN(x), K|V from raw context.
            q = pallas_linear(x2d, params["w_q_scaled"], ln=ln)
            Bc, Nk, Dc = ctx3d.shape
            kv = pallas_linear(ctx3d.reshape(Bc * Nk, Dc), params["w_kv"])
        o = pallas_flash_attention(q.reshape(B, N, HD),
                                   kv.reshape(B, Nk, 2 * HD),
                                   heads=self.n_heads, dim_head=self.d_head)
        return o.reshape(B * N, HD)

    def __call__(self, x, context=None):
        # TODO(synk): CrossAttention's `mask` path is not exposed by
        # BasicTransformerBlock.forward and is not implemented here.
        B, N, D = x.shape
        cd = self.compute_dtype
        x2d = x.reshape(B * N, D).astype(cd)
        ctx = None if context is None else context.astype(cd)

        # ---- attn1 (self-attention unless disable_self_attn) + residual ----
        mu1, rstd1 = pallas_ln_stats(x2d)
        ln1 = (mu1, rstd1, self.norm1_g, self.norm1_b)
        ctx1 = ctx if (self.disable_self_attn and ctx is not None) else None
        o1 = self._attention(x2d, ln1, B, N, ctx1, self.attn1)
        x2d = pallas_linear(o1, self.attn1["w_o"], self.attn1["b_o"],
                            residual=x2d)

        # ---- attn2 (cross-attention; self if context is None) + residual ----
        mu2, rstd2 = pallas_ln_stats(x2d)
        ln2 = (mu2, rstd2, self.norm2_g, self.norm2_b)
        o2 = self._attention(x2d, ln2, B, N, ctx, self.attn2)
        x2d = pallas_linear(o2, self.attn2["w_o"], self.attn2["b_o"],
                            residual=x2d)

        # ---- gated feed-forward (GEGLU) + residual ----
        mu3, rstd3 = pallas_ln_stats(x2d)
        ln3 = (mu3, rstd3, self.norm3_g, self.norm3_b)
        h = pallas_geglu(x2d, self.ff_wx, self.ff_wg, self.ff_bx, self.ff_bg,
                         ln=ln3)
        # TODO(synk): the FF down-projection could be fused into the GEGLU
        # kernel (emit_pipeline over ff_inner) so the (M, 4*dim) intermediate
        # never hits HBM; biggest win on v5e.
        x2d = pallas_linear(h, self.ff_w2, self.ff_b2, residual=x2d)

        return x2d.reshape(B, N, D).astype(x.dtype)


# ---------------------------------------------------------------------------
# Pure-JAX fp32 reference (same forward semantics, same stored weights) + demo
# ---------------------------------------------------------------------------

def reference_forward(mod, x, context=None):
    H, Dh = mod.n_heads, mod.d_head
    f32 = jnp.float32
    x = x.astype(f32)
    context = None if context is None else context.astype(f32)

    def ln(t, g, b, eps=1e-5):
        mu = jnp.mean(t, axis=-1, keepdims=True)
        var = jnp.mean((t - mu) ** 2, axis=-1, keepdims=True)
        return (t - mu) * jax.lax.rsqrt(var + eps) * g + b

    def attn(xn, ctx, p):
        B, Nq, _ = xn.shape
        _, Nk, _ = ctx.shape
        HD = H * Dh
        wq = p["w_q_scaled"].astype(f32)       # softmax scale already folded in
        wkv = p["w_kv"].astype(f32)
        wk, wv = wkv[:, :HD], wkv[:, HD:]
        q = xn @ wq
        k = ctx @ wk
        v = ctx @ wv
        q = q.reshape(B, Nq, H, Dh).transpose(0, 2, 1, 3)
        k = k.reshape(B, Nk, H, Dh).transpose(0, 2, 1, 3)
        v = v.reshape(B, Nk, H, Dh).transpose(0, 2, 1, 3)
        s = jnp.einsum("bhqd,bhkd->bhqk", q, k)
        a = jax.nn.softmax(s, axis=-1)
        o = jnp.einsum("bhqk,bhkd->bhqd", a, v)
        o = o.transpose(0, 2, 1, 3).reshape(B, Nq, HD)
        return o @ p["w_o"].astype(f32) + p["b_o"]

    def gelu_tanh(g):
        return 0.5 * g * (1.0 + jnp.tanh(_GELU_C * (g + 0.044715 * g ** 3)))

    xn1 = ln(x, mod.norm1_g, mod.norm1_b)
    ctx1 = context if (mod.disable_self_attn and context is not None) else xn1
    x = attn(xn1, ctx1, mod.attn1) + x
    xn2 = ln(x, mod.norm2_g, mod.norm2_b)
    ctx2 = context if context is not None else xn2
    x = attn(xn2, ctx2, mod.attn2) + x
    xn3 = ln(x, mod.norm3_g, mod.norm3_b)
    h = (xn3 @ mod.ff_wx.astype(f32) + mod.ff_bx) * \
        gelu_tanh(xn3 @ mod.ff_wg.astype(f32) + mod.ff_bg)
    x = h @ mod.ff_w2.astype(f32) + mod.ff_b2 + x
    return x


if __name__ == "__main__":
    key = jax.random.PRNGKey(0)
    kx, kc, kp = jax.random.split(key, 3)

    B, N, dim = 2, 16, 32            # queries: batch=2, seq=16, hidden=32
    n_heads, d_head = 4, 16          # inner_dim = 64
    Nk, context_dim = 8, 48          # cross-attention context

    x = jax.random.normal(kx, (B, N, dim), jnp.float32)
    context = jax.random.normal(kc, (B, Nk, context_dim), jnp.float32)

    # ---- bf16 block (production configuration) ----
    block_bf16 = BasicTransformerBlockPallas(
        dim, n_heads, d_head, dropout=0.0, context_dim=context_dim,
        gated_ff=True, checkpoint=True, disable_self_attn=False,
        key=kp, compute_dtype=jnp.bfloat16)

    out_bf16 = jax.block_until_ready(block_bf16(x, context))
    # Compare against fp32 math on the same (bf16-rounded) weights / inputs.
    x_r = x.astype(jnp.bfloat16).astype(jnp.float32)
    c_r = context.astype(jnp.bfloat16).astype(jnp.float32)
    ref_bf16 = reference_forward(block_bf16, x_r, c_r)
    assert out_bf16.shape == (B, N, dim), out_bf16.shape
    err_bf16 = float(jnp.max(jnp.abs(out_bf16 - ref_bf16)))
    assert err_bf16 < 2e-1, f"bf16 max |out - ref| = {err_bf16}"

    # ---- fp32 block (strict parity check of the same kernels) ----
    block_f32 = BasicTransformerBlockPallas(
        dim, n_heads, d_head, dropout=0.0, context_dim=context_dim,
        gated_ff=True, checkpoint=True, disable_self_attn=False,
        key=kp, compute_dtype=jnp.float32)
    out_f32 = jax.block_until_ready(block_f32(x, context))
    ref_f32 = reference_forward(block_f32, x, context)
    err_f32 = float(jnp.max(jnp.abs(out_f32 - ref_f32)))
    assert err_f32 < 3e-3, f"fp32 max |out - ref| = {err_f32}"

    print("KERNEL_OK")
</pallas_src>

<mosaic_0001>
module attributes {stable_mosaic.version = 11 : i64} {
  func.func @_ln_stats_kernel(%arg0: i32, %arg1: memref<32x32xbf16, #tpu.memory_space<vmem>>, %arg2: memref<32x1xf32, #tpu.memory_space<vmem>>, %arg3: memref<32x1xf32, #tpu.memory_space<vmem>>) attributes {dimension_semantics = [#tpu.dimension_semantics<parallel>], iteration_bounds = array<i64: 1>, scalar_prefetch = 0 : i64, scratch_operands = 0 : i64, tpu.core_type = #tpu.core_type<tc>, window_params = [{transform_indices = @transform_0, window_bounds = array<i64: 32, 32>}, {transform_indices = @transform_1, window_bounds = array<i64: 32, 1>}, {transform_indices = @transform_2, window_bounds = array<i64: 32, 1>}]} {
    %c0 = arith.constant 0 : index
    %c0_0 = arith.constant 0 : index
    %0 = vector.load %arg1[%c0, %c0_0] : memref<32x32xbf16, #tpu.memory_space<vmem>>, vector<32x32xbf16>
    %1 = arith.extf %0 : vector<32x32xbf16> to vector<32x32xf32>
    %cst = arith.constant dense<0.000000e+00> : vector<32xf32>
    %2 = vector.multi_reduction <add>, %1, %cst [1] : vector<32x32xf32> to vector<32xf32>
    %3 = vector.shape_cast %2 : vector<32xf32> to vector<32x1xf32>
    %cst_1 = arith.constant 3.200000e+01 : f32
    %4 = vector.broadcast %cst_1 : f32 to vector<32x1xf32>
    %5 = arith.divf %3, %4 : vector<32x1xf32>
    %6 = vector.broadcast %5 : vector<32x1xf32> to vector<32x32xf32>
    %7 = arith.subf %1, %6 : vector<32x32xf32>
    %8 = arith.mulf %7, %7 : vector<32x32xf32>
    %cst_2 = arith.constant dense<0.000000e+00> : vector<32xf32>
    %9 = vector.multi_reduction <add>, %8, %cst_2 [1] : vector<32x32xf32> to vector<32xf32>
    %10 = vector.shape_cast %9 : vector<32xf32> to vector<32x1xf32>
    %cst_3 = arith.constant 3.200000e+01 : f32
    %11 = vector.broadcast %cst_3 : f32 to vector<32x1xf32>
    %12 = arith.divf %10, %11 : vector<32x1xf32>
    %c0_4 = arith.constant 0 : index
    %c0_5 = arith.constant 0 : index
    %13 = vector.load %arg2[%c0_4, %c0_5] : memref<32x1xf32, #tpu.memory_space<vmem>>, vector<32x1xf32>
    tpu.vector_store %arg2[%c0_4, %c0_5], %5 {strides = array<i32>} : memref<32x1xf32, #tpu.memory_space<vmem>>, vector<32x1xf32>,
    %cst_6 = arith.constant 9.99999974E-6 : f32
    %14 = vector.broadcast %cst_6 : f32 to vector<32x1xf32>
    %15 = arith.addf %12, %14 : vector<32x1xf32>
    %16 = math.rsqrt %15 : vector<32x1xf32>
    %c0_7 = arith.constant 0 : index
    %c0_8 = arith.constant 0 : index
    %17 = vector.load %arg3[%c0_7, %c0_8] : memref<32x1xf32, #tpu.memory_space<vmem>>, vector<32x1xf32>
    tpu.vector_store %arg3[%c0_7, %c0_8], %16 {strides = array<i32>} : memref<32x1xf32, #tpu.memory_space<vmem>>, vector<32x1xf32>,
    return
  }
  func.func @transform_0(%arg0: i32) -> (i32, i32) {
    %c0_i32 = arith.constant 0 : i32
    %c0_i32_0 = arith.constant 0 : i32
    return %arg0, %c0_i32 : i32, i32
  }
  func.func @transform_1(%arg0: i32) -> (i32, i32) {
    %c0_i32 = arith.constant 0 : i32
    %c0_i32_0 = arith.constant 0 : i32
    return %arg0, %c0_i32 : i32, i32
  }
  func.func @transform_2(%arg0: i32) -> (i32, i32) {
    %c0_i32 = arith.constant 0 : i32
    %c0_i32_0 = arith.constant 0 : i32
    return %arg0, %c0_i32 : i32, i32
  }
}

</mosaic_0001>

<llo_original>
// kernel: tpu_custom_call.1
$region0: #{tpu_custom_call.1}
  #allocation0 [shape = 'u32[]', space=smem, size = 0x4, offset = 0x4, fixed_abs, tag = 'smem constant byte address 0x4 - core index']
  #allocation1 [shape = 'u32[144,128]{1,0:T(1,128)}', space=vmem, size = 0x12000, scoped, tag = 'internal scratch']
  %s0 = inlined_call_operand.hbm [shape: bf16[32,32], index: 0, kind: input, shape index: {}]
  %s1 = inlined_call_operand.vmem [shape: f32[32,1], index: 1, kind: output, shape index: {0}]
  %s2 = inlined_call_operand.vmem [shape: f32[32,1], index: 2, kind: output, shape index: {1}]
  %3 = xla_tuple %s1, %s2
  %s4 = sld [smem:[#allocation0]]
  $region26: #{tpu_custom_call.1} parent=0
    _
  %s6 = ssub.s32 1, %s4
  %s7 = scalar_select 0, %s6, %s4
  $region1: #{tpu_custom_call.1} parent=0
    #allocation2 [shape = 'u8[8192]{0}', space=vmem, size = 0x2000, scoped, tag = 'input window, operand 0, single buffered']
    #allocation3 [shape = 's32[1]{0}', space=sflag, size = 0x4, scoped, tag = 'scoped memory for tpu_custom_call.1']
    %8 = vsyncpa [#allocation3], 0
    // Predicated region
    $region2: #{tpu_custom_call.1} parent=1 // pred_check
      _
    $region3: #{tpu_custom_call.1} parent=1 // pred_check_branch
      %10 = sbr.rel (0) target = $region5
    $region4: #{tpu_custom_call.1} parent=1 // pred_region
      %s12 = ssub.s32 256, 256
      %13 = vsyncadd [#allocation3], %s12
      %s14 = sshll.u32 [#allocation2], 4
      %s15 = int_to_ptr.vmem [resolvable:$true] %s14
      %20 = dma.hbm_to_vmem [thread:$0]  %s0, 256, %s15, [#allocation3], 64, 64, 4
    $region5: #{tpu_custom_call.1} parent=1 // pred_fallthru
      _
    // Predicated region
    $region6: #{tpu_custom_call.1} parent=1 // pred_check
      _
    $region7: #{tpu_custom_call.1} parent=1 // pred_check_branch
      %22 = sbr.rel (0) target = $region9
    $region8: #{tpu_custom_call.1} parent=1 // pred_region
      %23 = dma.done [#allocation3], 256
    $region9: #{tpu_custom_call.1} parent=1 // pred_fallthru
      _
    %v24 = vld [vmem:[#allocation2] sm:$0xf]
    %v25 = vld [vmem:[#allocation2 + $0x4] sm:$0xf]
    %v26 = vld [vmem:[#allocation2 + $0x8] sm:$0xf]
    %v27 = vld [vmem:[#allocation2 + $0xc] sm:$0xf]
    %v28 = vunpack.c.l.bf16 %v24
    %v29 = vunpack.c.l.bf16 %v25
    %v30 = vunpack.c.l.bf16 %v26
    %v31 = vunpack.c.l.bf16 %v27
    %vm32 = vcmask 261120
    %v33 = vsel %vm32, %v28, 0.0
    %34 = vadd.xlane.f32.xlu0 %v33
    %v35 = vpop.xlane.xlu0 %34
    %v36 = vsel %vm32, %v29, 0.0
    %37 = vadd.xlane.f32.xlu0 %v36
    %v38 = vpop.xlane.xlu0 %37
    %v39 = vsel %vm32, %v30, 0.0
    %40 = vadd.xlane.f32.xlu0 %v39
    %v41 = vpop.xlane.xlu0 %40
    %v42 = vsel %vm32, %v31, 0.0
    %43 = vadd.xlane.f32.xlu0 %v42
    %v44 = vpop.xlane.xlu0 %43
    %v45 = vrcp.pop 32.0
    %v46 = vmul.f32 %v35, %v45
    %v47 = vmul.f32 %v38, %v45
    %v48 = vmul.f32 %v41, %v45
    %v49 = vmul.f32 %v44, %v45
    %v50 = vsub.f32 %v28, %v46
    %v51 = vsub.f32 %v29, %v47
    %v52 = vsub.f32 %v30, %v48
    %v53 = vsub.f32 %v31, %v49
    %v54 = vmul.f32 %v50, %v50
    %v55 = vmul.f32 %v51, %v51
    %v56 = vmul.f32 %v52, %v52
    %v57 = vmul.f32 %v53, %v53
    %v58 = vsel %vm32, %v54, 0.0
    %59 = vadd.xlane.f32.xlu0 %v58
    %v60 = vpop.xlane.xlu0 %59
    %v61 = vsel %vm32, %v55, 0.0
    %62 = vadd.xlane.f32.xlu0 %v61
    %v63 = vpop.xlane.xlu0 %62
    %v64 = vsel %vm32, %v56, 0.0
    %65 = vadd.xlane.f32.xlu0 %v64
    %v66 = vpop.xlane.xlu0 %65
    %v67 = vsel %vm32, %v57, 0.0
    %68 = vadd.xlane.f32.xlu0 %v67
    %v69 = vpop.xlane.xlu0 %68
    %v70 = vmul.f32 %v60, %v45
    %v71 = vmul.f32 %v63, %v45
    %v72 = vmul.f32 %v66, %v45
    %v73 = vmul.f32 %v69, %v45
    %vm74 = vcmask 7168
    %75 = vst.msk [vmem:[%s1] sm:$0xff] %vm74, %v46
    %76 = vst.msk [vmem:[%s1 + $0x8] sm:$0xff] %vm74, %v47
    %77 = vst.msk [vmem:[%s1 + $0x10] sm:$0xff] %vm74, %v48
    %78 = vst.msk [vmem:[%s1 + $0x18] sm:$0xff] %vm74, %v49
    %v79 = vadd.f32 %v70, 1e-05
    %v80 = vadd.f32 %v71, 1e-05
    %v81 = vadd.f32 %v72, 1e-05
    %v82 = vadd.f32 %v73, 1e-05
    %v83 = vrsqrt.pop %v79
    %v84 = vrsqrt.pop %v80
    %v85 = vrsqrt.pop %v81
    %v86 = vrsqrt.pop %v82
    %87 = vst.msk [vmem:[%s2] sm:$0xff] %vm74, %v83
    %88 = vst.msk [vmem:[%s2 + $0x8] sm:$0xff] %vm74, %v84
    %89 = vst.msk [vmem:[%s2 + $0x10] sm:$0xff] %vm74, %v85
    %90 = vst.msk [vmem:[%s2 + $0x18] sm:$0xff] %vm74, %v86
    // Predicated region
    $region10: #{tpu_custom_call.1} parent=1 // pred_check
      _
    $region11: #{tpu_custom_call.1} parent=1 // pred_check_branch
      %92 = sbr.rel (0) target = $region13
    $region12: #{tpu_custom_call.1} parent=1 // pred_region
      _
    $region13: #{tpu_custom_call.1} parent=1 // pred_fallthru
      _
    // Predicated region
    $region14: #{tpu_custom_call.1} parent=1 // pred_check
      _
    $region15: #{tpu_custom_call.1} parent=1 // pred_check_branch
      %94 = sbr.rel (0) target = $region17
    $region16: #{tpu_custom_call.1} parent=1 // pred_region
      _
    $region17: #{tpu_custom_call.1} parent=1 // pred_fallthru
      _
    // Predicated region
    $region18: #{tpu_custom_call.1} parent=1 // pred_check
      _
    $region19: #{tpu_custom_call.1} parent=1 // pred_check_branch
      %96 = sbr.rel (0) target = $region21
    $region20: #{tpu_custom_call.1} parent=1 // pred_region
      _
    $region21: #{tpu_custom_call.1} parent=1 // pred_fallthru
      _
    // Predicated region
    $region22: #{tpu_custom_call.1} parent=1 // pred_check
      _
    $region23: #{tpu_custom_call.1} parent=1 // pred_check_branch
      %98 = sbr.rel (0) target = $region25
    $region24: #{tpu_custom_call.1} parent=1 // pred_region
      _
    $region25: #{tpu_custom_call.1} parent=1 // pred_fallthru
      _
    %99 = vsyncpa [#allocation3], 1

</llo_original>
